<compile_context>
chip_gen: v7x
topology: tpu7x:2x2x1
jax: 0.10.0
libtpu: 0.0.40
codegen_flags: <defaults>
</compile_context>

<pallas_src>
import jax
import jax.numpy as jnp
from jax.experimental import pallas as pl
from jax.experimental.pallas import tpu as pltpu

LANES = 512       # slab width: lane-dense, multiple of 128
ROW_TILE = 1024   # rows per grid step -> 1024*512*4B = 2 MiB f32 block


def _mish_kernel(x_ref, o_ref):
    # Compute in f32 regardless of I/O dtype (bf16 I/O keeps HBM traffic low,
    # f32 math keeps parity with the f32 PyTorch reference).
    x = x_ref[...].astype(jnp.float32)
    # tanh(softplus(x)) = 1 - 2 / ((1 + e^x)^2 + 1); clamp exp and use
    # mish(x) ~= x for large positive x to avoid f32 overflow.
    e = jnp.exp(jnp.minimum(x, 20.0))
    t = 1.0 + e
    y = x * (1.0 - 2.0 / (t * t + 1.0))
    y = jnp.where(x > 20.0, x, y)
    o_ref[...] = y.astype(o_ref.dtype)


def _mish_slab(slab):
    """Run the Pallas kernel over a (rows, LANES) slab."""
    rows, lanes = slab.shape
    block_rows = min(ROW_TILE, rows)  # == rows (full dim) when small, else mult. of 8/16
    grid = (pl.cdiv(rows, block_rows),)
    return pl.pallas_call(
        _mish_kernel,
        out_shape=jax.ShapeDtypeStruct((rows, lanes), slab.dtype),
        grid_spec=pltpu.PrefetchScalarGridSpec(
            num_scalar_prefetch=0,
            grid=grid,
            in_specs=[pl.BlockSpec((block_rows, lanes), lambda i: (i, 0))],
            out_specs=pl.BlockSpec((block_rows, lanes), lambda i: (i, 0)),
        ),
        compiler_params=pltpu.CompilerParams(
            dimension_semantics=("parallel",),
        ),
    )(slab)


def _mish_ref(x):
    return x * jnp.tanh(jax.nn.softplus(x))


def mish(x):
    """Mish activation, elementwise, any shape / float dtype."""
    orig_shape = x.shape
    n = x.size
    flat = x.reshape(-1)
    n_main = (n // LANES) * LANES

    if n_main == 0:
        # Tensor smaller than one lane-row; plain jnp is cheapest.
        return _mish_ref(flat).astype(x.dtype).reshape(orig_shape)

    slab = flat[:n_main].reshape(n_main // LANES, LANES)
    y_main = _mish_slab(slab).reshape(-1)

    if n_main == n:
        # Fully aligned: zero-copy reshape in, zero-copy reshape out.
        return y_main.reshape(orig_shape)

    # Small (< LANES elements) unaligned tail handled in plain jnp.
    y_rem = _mish_ref(flat[n_main:]).astype(x.dtype)
    return jnp.concatenate([y_main, y_rem]).reshape(orig_shape)


if __name__ == "__main__":
    key = jax.random.PRNGKey(0)
    x = jax.random.normal(key, (2, 4, 16, 16), dtype=jnp.float32) * 3.0

    y = mish(x)
    jax.block_until_ready(y)

    y_ref = _mish_ref(x)
    assert y.shape == x.shape and y.dtype == x.dtype
    assert jnp.allclose(y, y_ref, atol=1e-5, rtol=1e-5), "mismatch vs reference"

    # Also exercise an unaligned size to cover the tail path.
    x2 = jax.random.normal(jax.random.PRNGKey(1), (3, 5, 7, 7), dtype=jnp.float32) * 3.0
    y2 = mish(x2)
    jax.block_until_ready(y2)
    assert jnp.allclose(y2, _mish_ref(x2), atol=1e-5, rtol=1e-5), "mismatch (tail path)"

    print("KERNEL_OK")
</pallas_src>

<mosaic_0001>
module attributes {stable_mosaic.version = 11 : i64} {
  func.func @_mish_kernel(%arg0: i32, %arg1: memref<4x512xf32, #tpu.memory_space<vmem>>, %arg2: memref<4x512xf32, #tpu.memory_space<vmem>>) attributes {dimension_semantics = [#tpu.dimension_semantics<parallel>], iteration_bounds = array<i64: 1>, scalar_prefetch = 0 : i64, scratch_operands = 0 : i64, tpu.core_type = #tpu.core_type<tc>, window_params = [{transform_indices = @transform_0, window_bounds = array<i64: 4, 512>}, {transform_indices = @transform_1, window_bounds = array<i64: 4, 512>}]} {
    %c0 = arith.constant 0 : index
    %c0_0 = arith.constant 0 : index
    %0 = vector.load %arg1[%c0, %c0_0] : memref<4x512xf32, #tpu.memory_space<vmem>>, vector<4x512xf32>
    %cst = arith.constant 2.000000e+01 : f32
    %1 = vector.broadcast %cst : f32 to vector<4x512xf32>
    %2 = arith.minimumf %0, %1 : vector<4x512xf32>
    %3 = math.exp %2 : vector<4x512xf32>
    %cst_1 = arith.constant 1.000000e+00 : f32
    %4 = vector.broadcast %cst_1 : f32 to vector<4x512xf32>
    %5 = arith.addf %4, %3 : vector<4x512xf32>
    %6 = arith.mulf %5, %5 : vector<4x512xf32>
    %cst_2 = arith.constant 1.000000e+00 : f32
    %7 = vector.broadcast %cst_2 : f32 to vector<4x512xf32>
    %8 = arith.addf %6, %7 : vector<4x512xf32>
    %cst_3 = arith.constant 2.000000e+00 : f32
    %9 = vector.broadcast %cst_3 : f32 to vector<4x512xf32>
    %10 = arith.divf %9, %8 : vector<4x512xf32>
    %cst_4 = arith.constant 1.000000e+00 : f32
    %11 = vector.broadcast %cst_4 : f32 to vector<4x512xf32>
    %12 = arith.subf %11, %10 : vector<4x512xf32>
    %13 = arith.mulf %0, %12 : vector<4x512xf32>
    %cst_5 = arith.constant 2.000000e+01 : f32
    %14 = vector.broadcast %cst_5 : f32 to vector<4x512xf32>
    %15 = arith.cmpf ogt, %0, %14 : vector<4x512xf32>
    %16 = arith.select %15, %0, %13 : vector<4x512xi1>, vector<4x512xf32>
    %c0_6 = arith.constant 0 : index
    %c0_7 = arith.constant 0 : index
    %17 = vector.load %arg2[%c0_6, %c0_7] : memref<4x512xf32, #tpu.memory_space<vmem>>, vector<4x512xf32>
    tpu.vector_store %arg2[%c0_6, %c0_7], %16 {strides = array<i32>} : memref<4x512xf32, #tpu.memory_space<vmem>>, vector<4x512xf32>,
    return
  }
  func.func @transform_0(%arg0: i32) -> (i32, i32) {
    %c0_i32 = arith.constant 0 : i32
    %c0_i32_0 = arith.constant 0 : i32
    return %arg0, %c0_i32 : i32, i32
  }
  func.func @transform_1(%arg0: i32) -> (i32, i32) {
    %c0_i32 = arith.constant 0 : i32
    %c0_i32_0 = arith.constant 0 : i32
    return %arg0, %c0_i32 : i32, i32
  }
}

</mosaic_0001>

<llo_original>
// kernel: tpu_custom_call.1
$region0: #{tpu_custom_call.1}
  #allocation0 [shape = 'u32[]', space=smem, size = 0x4, offset = 0x4, fixed_abs, tag = 'smem constant byte address 0x4 - core index']
  #allocation1 [shape = 'u32[144,128]{1,0:T(1,128)}', space=vmem, size = 0x12000, scoped, tag = 'internal scratch']
  %s0 = inlined_call_operand.hbm [shape: f32[4,512], index: 0, kind: input, shape index: {}]
  %s1 = inlined_call_operand.hbm [shape: f32[4,512], index: 1, kind: output, shape index: {}]
  %s2 = sld [smem:[#allocation0]]
  $region18: #{tpu_custom_call.1} parent=0
    _
  %s4 = ssub.s32 1, %s2
  %s5 = scalar_select 0, %s4, %s2
  $region1: #{tpu_custom_call.1} parent=0
    #allocation2 [shape = 'u8[8192]{0}', space=vmem, size = 0x2000, scoped, tag = 'input window, operand 0, single buffered']
    #allocation3 [shape = 's32[1]{0}', space=sflag, size = 0x4, scoped, tag = 'scoped memory for tpu_custom_call.1']
    #allocation4 [shape = 's32[1]{0}', space=sflag, size = 0x4, scoped, tag = 'scoped memory for tpu_custom_call.1']
    #allocation5 [shape = 'u8[8192]{0}', space=vmem, size = 0x2000, scoped, tag = 'output window, operand 0, single buffered']
    %6 = vsyncpa [#allocation3], 0
    %7 = vsyncpa [#allocation4], 0
    // Predicated region
    $region2: #{tpu_custom_call.1} parent=1 // pred_check
      _
    $region3: #{tpu_custom_call.1} parent=1 // pred_check_branch
      %9 = sbr.rel (0) target = $region5
    $region4: #{tpu_custom_call.1} parent=1 // pred_region
      %s11 = ssub.s32 256, 256
      %12 = vsyncadd [#allocation3], %s11
      %s14 = sshll.u32 [#allocation2], 4
      %s15 = int_to_ptr.vmem [resolvable:$true] %s14
      %17 = dma.hbm_to_vmem [thread:$0]  %s0, 256, %s15, [#allocation3]
    $region5: #{tpu_custom_call.1} parent=1 // pred_fallthru
      _
    // Predicated region
    $region6: #{tpu_custom_call.1} parent=1 // pred_check
      _
    $region7: #{tpu_custom_call.1} parent=1 // pred_check_branch
      %19 = sbr.rel (0) target = $region9
    $region8: #{tpu_custom_call.1} parent=1 // pred_region
      %20 = dma.done [#allocation3], 256
    $region9: #{tpu_custom_call.1} parent=1 // pred_fallthru
      _
    %v21 = vld [vmem:[#allocation2] sm:$0xff]
    %v22 = vld [vmem:[#allocation2 + $0x8] sm:$0xff]
    %v23 = vmin.f32 %v21, 20.0
    %v24 = vmin.f32 %v22, 20.0
    %v25 = vmul.f32 %v23, 1.442695
    %v26 = vpow.pop %v25
    %v27 = vmul.f32 %v24, 1.442695
    %v28 = vpow.pop %v27
    %v29 = vadd.f32 %v26, 1.0
    %v30 = vadd.f32 %v28, 1.0
    %v31 = vmul.f32 %v29, %v29
    %v32 = vmul.f32 %v30, %v30
    %v33 = vadd.f32 %v31, 1.0
    %v34 = vadd.f32 %v32, 1.0
    %v35 = vrcp.pop %v33
    %v36 = vmul.f32 2.0, %v35
    %v37 = vrcp.pop %v34
    %v38 = vmul.f32 2.0, %v37
    %v39 = vsub.f32 1.0, %v36
    %v40 = vsub.f32 1.0, %v38
    %v41 = vmul.f32 %v21, %v39
    %v42 = vmul.f32 %v22, %v40
    %vm43 = vcmp.gt.f32.partialorder %v21, 20.0
    %vm44 = vcmp.gt.f32.partialorder %v22, 20.0
    %v45 = vsel %vm43, %v21, %v41
    %v46 = vsel %vm44, %v22, %v42
    %47 = vst [vmem:[#allocation5] sm:$0xff] %v45
    %48 = vst [vmem:[#allocation5 + $0x8] sm:$0xff] %v46
    // Predicated region
    $region10: #{tpu_custom_call.1} parent=1 // pred_check
      _
    $region11: #{tpu_custom_call.1} parent=1 // pred_check_branch
      %50 = sbr.rel (0) target = $region13
    $region12: #{tpu_custom_call.1} parent=1 // pred_region
      %s52 = ssub.s32 256, 256
      %53 = vsyncadd [#allocation4], %s52
      %s55 = sshll.u32 [#allocation5], 4
      %s56 = int_to_ptr.vmem [resolvable:$true] %s55
      %58 = dma.vmem_to_hbm [thread:$0]  %s56, 256, %s1, [#allocation4]
    $region13: #{tpu_custom_call.1} parent=1 // pred_fallthru
      _
    // Predicated region
    $region14: #{tpu_custom_call.1} parent=1 // pred_check
      _
    $region15: #{tpu_custom_call.1} parent=1 // pred_check_branch
      %60 = sbr.rel (0) target = $region17
    $region16: #{tpu_custom_call.1} parent=1 // pred_region
      %61 = dma.done [#allocation4], 256
    $region17: #{tpu_custom_call.1} parent=1 // pred_fallthru
      _
    %62 = vsyncpa [#allocation3], 1
    %63 = vsyncpa [#allocation4], 1

</llo_original>
